<compile_context>
chip_gen: v6e
topology: v6e:2x2x1
jax: 0.10.0
libtpu: 0.0.40
codegen_flags: <defaults>
</compile_context>

<pallas_src>
import numpy as np
import jax
import jax.numpy as jnp
from jax import lax
from jax.experimental import pallas as pl
from jax.experimental.pallas import tpu as pltpu


# ----------------------------------------------------------------------------
# Host-side bicubic interpolation matrix (torch F.interpolate style bicubic:
# align_corners=False, a=-0.75, border taps clamped to the edge pixel).
# TODO(synk): exact PIL.Image.BICUBIC coefficients (a=-0.5 + PIL rounding) if
# bit-exact parity with the PIL path is ever required.
# ----------------------------------------------------------------------------
def _cubic_weight(s, a):
    s = abs(float(s))
    if s <= 1.0:
        return (a + 2.0) * s ** 3 - (a + 3.0) * s ** 2 + 1.0
    if s < 2.0:
        return a * s ** 3 - 5.0 * a * s ** 2 + 8.0 * a * s - 4.0 * a
    return 0.0


def bicubic_matrix(n_in, n_out, a=-0.75):
    """(n_out, n_in) matrix M so that  out = M @ in  is 1-D bicubic resize."""
    scale = n_in / n_out
    m = np.zeros((n_out, n_in), np.float32)
    for o in range(n_out):
        src = (o + 0.5) * scale - 0.5
        i0 = int(np.floor(src))
        t = src - i0
        for k in range(-1, 3):
            w = _cubic_weight(k - t, a)
            idx = min(max(i0 + k, 0), n_in - 1)
            m[o, idx] += w
    return m


def _shift_matrix(n, t):
    """(n, n) S with (S @ y)[i] = y[i + t - 1], zero outside -- i.e. the action
    of conv tap t (kernel size 3, zero padding 1) along one axis."""
    s = np.zeros((n, n), np.float32)
    for i in range(n):
        j = i + t - 1
        if 0 <= j < n:
            s[i, j] = 1.0
    return s


# ----------------------------------------------------------------------------
# Host-side composition of (bicubic 2x resize) o conv1 o conv2.
#
#   out[o] = sum_{c,p,a,q,b} K[o,c,p,a,q,b] * (S_p S_a A_H) x[c] (S_q S_b A_W)^T
#            + bias_map[o]
#   K[o,c,p,a,q,b] = sum_m w2[o,m,p,q] * w1[m,c,a,b]
#
# grouped by row-tap pair g = (p, a) so the kernel only does
#   M_g = X2 @ b_wide[g]      (X2 = x as (H, Cin*W))
#   out = rh_cat @ vstack_g(M_g) + bias_wide
# ----------------------------------------------------------------------------
def _prepare_operands(w1, b1, w2, b2, h, w):
    w1 = np.asarray(w1, np.float32)   # (Cmid, Cin, 3, 3)
    b1 = np.asarray(b1, np.float32)   # (Cmid,)
    w2 = np.asarray(w2, np.float32)   # (Cout, Cmid, 3, 3)
    b2 = np.asarray(b2, np.float32)   # (Cout,)
    cmid, cin = w1.shape[:2]
    cout = w2.shape[0]
    ho, wo = 2 * h, 2 * w

    a_h = bicubic_matrix(h, ho)       # (Ho, H)
    a_w = bicubic_matrix(w, wo)       # (Wo, W)

    sh_r = [_shift_matrix(ho, t) for t in range(3)]   # row-tap shift operators
    sh_c = [_shift_matrix(wo, t) for t in range(3)]   # col-tap shift operators

    # K[o, c, p, a, q, b] = sum_m w2[o, m, p, q] * w1[m, c, a, b]
    kk = np.einsum('ompq,mcab->ocpaqb', w2, w1).astype(np.float32)

    # Column operators, pre-transposed for right multiplication:
    # cwt[q, b] = (S_q @ S_b @ A_W)^T : (W, Wo)
    cwt = np.stack([np.stack([(sh_c[q] @ sh_c[b] @ a_w).T for b in range(3)])
                    for q in range(3)])                         # (3, 3, W, Wo)

    ng = 9
    rh_cat = np.zeros((ho, ng * h), np.float32)                 # (Ho, 9*H)
    b_wide = np.zeros((ng, cin * w, cout * wo), np.float32)     # (9, Cin*W, Cout*Wo)
    for p in range(3):
        for a in range(3):
            g = p * 3 + a
            # Row operator for this tap group (exact border clipping included).
            rh_cat[:, g * h:(g + 1) * h] = sh_r[p] @ sh_r[a] @ a_h
            # Fold conv weights + column interp + column clipping per (c, o).
            for c in range(cin):
                for o in range(cout):
                    blk = np.einsum('qb,qbwj->wj', kk[o, c, p, a], cwt)
                    b_wide[g, c * w:(c + 1) * w, o * wo:(o + 1) * wo] = blk

    # Spatially varying bias map: b2 + sum_m b1[m] * sum_{p,q} w2[o,m,p,q] over
    # the conv2 taps that land inside y1's support (differs on the 1-px border).
    rmask = np.stack([((np.arange(ho) + t - 1 >= 0) & (np.arange(ho) + t - 1 < ho))
                      for t in range(3)]).astype(np.float32)    # (3, Ho)
    cmask = np.stack([((np.arange(wo) + t - 1 >= 0) & (np.arange(wo) + t - 1 < wo))
                      for t in range(3)]).astype(np.float32)    # (3, Wo)
    wb = np.einsum('ompq,m->opq', w2, b1)                       # (Cout, 3, 3)
    bias = b2[:, None, None] + np.einsum('opq,pi,qj->oij', wb, rmask, cmask)
    bias_wide = np.transpose(bias, (1, 0, 2)).reshape(ho, cout * wo)
    return rh_cat, b_wide, bias_wide


# ----------------------------------------------------------------------------
# Fused kernel: one grid step = (batch element, output-row tile).
# ----------------------------------------------------------------------------
def resize_conv_kernel(xt_ref, bw_ref, rh_ref, bias_ref, o_ref, mcat_ref):
    """
    xt_ref   : (1, H, Cin*W)        image, channels folded into the lane axis
    bw_ref   : (NG, Cin*W, Cout*Wo) host-composed column/weight operators
    rh_ref   : (TR, NG*H)           host-composed row operators (row tile)
    bias_ref : (TR, Cout*Wo)        spatially varying bias map (row tile)
    o_ref    : (1, TR, Cout*Wo)     output row tile, W dense in lanes
    mcat_ref : (NG*H, Cout*Wo)      VMEM scratch for stacked stage-1 results
    """
    x2 = xt_ref[0].astype(jnp.float32)                 # (H, Cin*W)
    ng = bw_ref.shape[0]
    h = x2.shape[0]

    # Stage 1: one matmul per row-tap group (shared lhs, K = Cin*W).  Results
    # go to disjoint, sublane-aligned bands of VMEM scratch -- no accumulating
    # dot chain, no per-tap MRF pop + vadd, no lane slicing.
    for g in range(ng):                                # static unroll, NG = 9
        mcat_ref[g * h:(g + 1) * h, :] = jnp.dot(
            x2, bw_ref[g], preferred_element_type=jnp.float32)

    # Stage 2: a single K = NG*H matmul folding the row interpolation, both
    # convs' row taps and the exact border clipping, plus the bias map.
    out = jnp.dot(rh_ref[...], mcat_ref[...],
                  preferred_element_type=jnp.float32) + bias_ref[...]
    o_ref[...] = out[None].astype(o_ref.dtype)


# ----------------------------------------------------------------------------
# Wrapper: NCHW in, NCHW out.
# ----------------------------------------------------------------------------
def resize_conv_forward(x, w1, b1, w2, b2):
    """x: (N, Cin, H, W); w1: (Cmid, Cin, 3, 3) OIHW; w2: (Cout, Cmid, 3, 3)."""
    n, cin, h, w = x.shape
    cout = w2.shape[0]
    ho, wo = 2 * h, 2 * w
    ng = 9

    rh_cat, b_wide, bias_wide = _prepare_operands(w1, b1, w2, b2, h, w)

    # Input layout plumbing (tiny, wrapper-side): (N, Cin, H, W) -> (N, H, Cin*W)
    # so the in-kernel channel contraction is one K = Cin*W matmul.
    xt = jnp.transpose(x, (0, 2, 1, 3)).reshape(n, h, cin * w)

    # Output-row tile axis: second "parallel" grid dim for v7x's 2 TensorCores,
    # and the axis to shrink against VMEM limits at production resolutions.
    tr = ho // 2 if (ho % 2 == 0 and (ho // 2) % 8 == 0) else ho
    n_rt = ho // tr

    out = pl.pallas_call(
        resize_conv_kernel,
        out_shape=jax.ShapeDtypeStruct((n, ho, cout * wo), x.dtype),
        grid_spec=pltpu.PrefetchScalarGridSpec(
            num_scalar_prefetch=0,
            grid=(n, n_rt),
            in_specs=[
                pl.BlockSpec((1, h, cin * w), lambda b, r: (b, 0, 0)),
                pl.BlockSpec((ng, cin * w, cout * wo), lambda b, r: (0, 0, 0)),
                pl.BlockSpec((tr, ng * h), lambda b, r: (r, 0)),
                pl.BlockSpec((tr, cout * wo), lambda b, r: (r, 0)),
            ],
            out_specs=pl.BlockSpec((1, tr, cout * wo), lambda b, r: (b, r, 0)),
            scratch_shapes=[pltpu.VMEM((ng * h, cout * wo), jnp.float32)],
        ),
        compiler_params=pltpu.CompilerParams(
            dimension_semantics=("parallel", "parallel")),
        # TODO(synk): at production H, W set vmem_limit_bytes, mark the
        # grid-invariant operands pipeline_mode=pl.Buffered(1), and cast
        # matmul operands to bf16 if the accuracy budget allows.
    )(xt, jnp.asarray(b_wide), jnp.asarray(rh_cat), jnp.asarray(bias_wide))

    # (N, Ho, Cout*Wo) -> (N, Cout, Ho, Wo).  For Cout == 1 (this module) this
    # is a metadata-only reshape.
    return out.reshape(n, ho, cout, wo).transpose(0, 2, 1, 3)


# ----------------------------------------------------------------------------
# Pure-JAX reference (same bicubic matrices, independent lax.conv path).
# ----------------------------------------------------------------------------
def resize_conv_reference(x, w1, b1, w2, b2):
    n, cin, h, w = x.shape
    ho, wo = 2 * h, 2 * w
    ah = jnp.asarray(bicubic_matrix(h, ho))
    aw = jnp.asarray(bicubic_matrix(w, wo))
    xu = jnp.einsum('rh,nchw,sw->ncrs', ah, x, aw,
                    precision=lax.Precision.HIGHEST)
    dn = ('NCHW', 'OIHW', 'NCHW')
    y1 = lax.conv_general_dilated(xu, w1, (1, 1), 'SAME', dimension_numbers=dn,
                                  precision=lax.Precision.HIGHEST)
    y1 = y1 + b1[None, :, None, None]
    out = lax.conv_general_dilated(y1, w2, (1, 1), 'SAME', dimension_numbers=dn,
                                   precision=lax.Precision.HIGHEST)
    out = out + b2[None, :, None, None]
    return out


if __name__ == "__main__":
    # Shapes fixed by the module: Conv2d(4,16,3) -> Conv2d(16,1,3), 2x resize.
    N, Cin, Cmid, Cout, H, W = 2, 4, 16, 1, 16, 16

    key = jax.random.PRNGKey(0)
    kx, k1, k2, k3, k4 = jax.random.split(key, 5)

    x = jax.random.normal(kx, (N, Cin, H, W), jnp.float32)
    w1 = jax.random.normal(k1, (Cmid, Cin, 3, 3), jnp.float32) * 0.1
    b1 = jax.random.normal(k2, (Cmid,), jnp.float32) * 0.1
    w2 = jax.random.normal(k3, (Cout, Cmid, 3, 3), jnp.float32) * 0.1
    b2 = jax.random.normal(k4, (Cout,), jnp.float32) * 0.1

    out = resize_conv_forward(x, w1, b1, w2, b2)
    out = jax.block_until_ready(out)

    ref = resize_conv_reference(x, w1, b1, w2, b2)
    assert out.shape == (N, Cout, 2 * H, 2 * W), out.shape
    max_err = float(jnp.max(jnp.abs(out - ref)))
    assert jnp.allclose(out, ref, atol=2e-3, rtol=2e-3), (
        f"mismatch vs reference, max abs err {max_err}")

    print("KERNEL_OK")
</pallas_src>

<mosaic_0001>
module attributes {stable_mosaic.version = 11 : i64} {
  func.func @resize_conv_kernel(%arg0: i32, %arg1: i32, %arg2: memref<1x16x64xf32, #tpu.memory_space<vmem>>, %arg3: memref<9x64x32xf32, #tpu.memory_space<vmem>>, %arg4: memref<16x144xf32, #tpu.memory_space<vmem>>, %arg5: memref<16x32xf32, #tpu.memory_space<vmem>>, %arg6: memref<1x16x32xf32, #tpu.memory_space<vmem>>, %arg7: memref<144x32xf32, #tpu.memory_space<vmem>>) attributes {dimension_semantics = [#tpu.dimension_semantics<parallel>, #tpu.dimension_semantics<parallel>], iteration_bounds = array<i64: 2, 2>, scalar_prefetch = 0 : i64, scratch_operands = 1 : i64, tpu.core_type = #tpu.core_type<tc>, window_params = [{transform_indices = @transform_0, window_bounds = array<i64: 1, 16, 64>}, {pipeline_mode = #tpu.pipeline_mode<synchronous>, transform_indices = @transform_1, window_bounds = array<i64: 9, 64, 32>}, {transform_indices = @transform_2, window_bounds = array<i64: 16, 144>}, {transform_indices = @transform_3, window_bounds = array<i64: 16, 32>}, {transform_indices = @transform_4, window_bounds = array<i64: 1, 16, 32>}]} {
    %c0 = arith.constant 0 : index
    %c0_0 = arith.constant 0 : index
    %c0_1 = arith.constant 0 : index
    %0 = vector.load %arg2[%c0, %c0_0, %c0_1] : memref<1x16x64xf32, #tpu.memory_space<vmem>>, vector<1x16x64xf32>
    %1 = vector.shape_cast %0 : vector<1x16x64xf32> to vector<16x64xf32>
    %c0_2 = arith.constant 0 : index
    %c0_3 = arith.constant 0 : index
    %c0_4 = arith.constant 0 : index
    %2 = vector.load %arg3[%c0_2, %c0_3, %c0_4] : memref<9x64x32xf32, #tpu.memory_space<vmem>>, vector<1x64x32xf32>
    %3 = vector.shape_cast %2 : vector<1x64x32xf32> to vector<64x32xf32>
    %cst = arith.constant dense<0.000000e+00> : vector<16x32xf32>
    %4 = tpu.matmul %1, %3, %cst {dimension_numbers = #tpu.dot_dimension_numbers<[1], [0], [0], [1], [0, 0, 1, 1], [], []>} : vector<16x64xf32>, vector<64x32xf32>, vector<16x32xf32> -> vector<16x32xf32>
    %c0_5 = arith.constant 0 : index
    %c0_6 = arith.constant 0 : index
    %5 = vector.load %arg7[%c0_5, %c0_6] : memref<144x32xf32, #tpu.memory_space<vmem>>, vector<16x32xf32>
    tpu.vector_store %arg7[%c0_5, %c0_6], %4 {strides = array<i32>} : memref<144x32xf32, #tpu.memory_space<vmem>>, vector<16x32xf32>,
    %c1 = arith.constant 1 : index
    %c0_7 = arith.constant 0 : index
    %c0_8 = arith.constant 0 : index
    %6 = vector.load %arg3[%c1, %c0_7, %c0_8] : memref<9x64x32xf32, #tpu.memory_space<vmem>>, vector<1x64x32xf32>
    %7 = vector.shape_cast %6 : vector<1x64x32xf32> to vector<64x32xf32>
    %cst_9 = arith.constant dense<0.000000e+00> : vector<16x32xf32>
    %8 = tpu.matmul %1, %7, %cst_9 {dimension_numbers = #tpu.dot_dimension_numbers<[1], [0], [0], [1], [0, 0, 1, 1], [], []>} : vector<16x64xf32>, vector<64x32xf32>, vector<16x32xf32> -> vector<16x32xf32>
    %c16 = arith.constant 16 : index
    %c0_10 = arith.constant 0 : index
    %9 = vector.load %arg7[%c16, %c0_10] : memref<144x32xf32, #tpu.memory_space<vmem>>, vector<16x32xf32>
    tpu.vector_store %arg7[%c16, %c0_10], %8 {strides = array<i32>} : memref<144x32xf32, #tpu.memory_space<vmem>>, vector<16x32xf32>,
    %c2 = arith.constant 2 : index
    %c0_11 = arith.constant 0 : index
    %c0_12 = arith.constant 0 : index
    %10 = vector.load %arg3[%c2, %c0_11, %c0_12] : memref<9x64x32xf32, #tpu.memory_space<vmem>>, vector<1x64x32xf32>
    %11 = vector.shape_cast %10 : vector<1x64x32xf32> to vector<64x32xf32>
    %cst_13 = arith.constant dense<0.000000e+00> : vector<16x32xf32>
    %12 = tpu.matmul %1, %11, %cst_13 {dimension_numbers = #tpu.dot_dimension_numbers<[1], [0], [0], [1], [0, 0, 1, 1], [], []>} : vector<16x64xf32>, vector<64x32xf32>, vector<16x32xf32> -> vector<16x32xf32>
    %c32 = arith.constant 32 : index
    %c0_14 = arith.constant 0 : index
    %13 = vector.load %arg7[%c32, %c0_14] : memref<144x32xf32, #tpu.memory_space<vmem>>, vector<16x32xf32>
    tpu.vector_store %arg7[%c32, %c0_14], %12 {strides = array<i32>} : memref<144x32xf32, #tpu.memory_space<vmem>>, vector<16x32xf32>,
    %c3 = arith.constant 3 : index
    %c0_15 = arith.constant 0 : index
    %c0_16 = arith.constant 0 : index
    %14 = vector.load %arg3[%c3, %c0_15, %c0_16] : memref<9x64x32xf32, #tpu.memory_space<vmem>>, vector<1x64x32xf32>
    %15 = vector.shape_cast %14 : vector<1x64x32xf32> to vector<64x32xf32>
    %cst_17 = arith.constant dense<0.000000e+00> : vector<16x32xf32>
    %16 = tpu.matmul %1, %15, %cst_17 {dimension_numbers = #tpu.dot_dimension_numbers<[1], [0], [0], [1], [0, 0, 1, 1], [], []>} : vector<16x64xf32>, vector<64x32xf32>, vector<16x32xf32> -> vector<16x32xf32>
    %c48 = arith.constant 48 : index
    %c0_18 = arith.constant 0 : index
    %17 = vector.load %arg7[%c48, %c0_18] : memref<144x32xf32, #tpu.memory_space<vmem>>, vector<16x32xf32>
    tpu.vector_store %arg7[%c48, %c0_18], %16 {strides = array<i32>} : memref<144x32xf32, #tpu.memory_space<vmem>>, vector<16x32xf32>,
    %c4 = arith.constant 4 : index
    %c0_19 = arith.constant 0 : index
    %c0_20 = arith.constant 0 : index
    %18 = vector.load %arg3[%c4, %c0_19, %c0_20] : memref<9x64x32xf32, #tpu.memory_space<vmem>>, vector<1x64x32xf32>
    %19 = vector.shape_cast %18 : vector<1x64x32xf32> to vector<64x32xf32>
    %cst_21 = arith.constant dense<0.000000e+00> : vector<16x32xf32>
    %20 = tpu.matmul %1, %19, %cst_21 {dimension_numbers = #tpu.dot_dimension_numbers<[1], [0], [0], [1], [0, 0, 1, 1], [], []>} : vector<16x64xf32>, vector<64x32xf32>, vector<16x32xf32> -> vector<16x32xf32>
    %c64 = arith.constant 64 : index
    %c0_22 = arith.constant 0 : index
    %21 = vector.load %arg7[%c64, %c0_22] : memref<144x32xf32, #tpu.memory_space<vmem>>, vector<16x32xf32>
    tpu.vector_store %arg7[%c64, %c0_22], %20 {strides = array<i32>} : memref<144x32xf32, #tpu.memory_space<vmem>>, vector<16x32xf32>,
    %c5 = arith.constant 5 : index
    %c0_23 = arith.constant 0 : index
    %c0_24 = arith.constant 0 : index
    %22 = vector.load %arg3[%c5, %c0_23, %c0_24] : memref<9x64x32xf32, #tpu.memory_space<vmem>>, vector<1x64x32xf32>
    %23 = vector.shape_cast %22 : vector<1x64x32xf32> to vector<64x32xf32>
    %cst_25 = arith.constant dense<0.000000e+00> : vector<16x32xf32>
    %24 = tpu.matmul %1, %23, %cst_25 {dimension_numbers = #tpu.dot_dimension_numbers<[1], [0], [0], [1], [0, 0, 1, 1], [], []>} : vector<16x64xf32>, vector<64x32xf32>, vector<16x32xf32> -> vector<16x32xf32>
    %c80 = arith.constant 80 : index
    %c0_26 = arith.constant 0 : index
    %25 = vector.load %arg7[%c80, %c0_26] : memref<144x32xf32, #tpu.memory_space<vmem>>, vector<16x32xf32>
    tpu.vector_store %arg7[%c80, %c0_26], %24 {strides = array<i32>} : memref<144x32xf32, #tpu.memory_space<vmem>>, vector<16x32xf32>,
    %c6 = arith.constant 6 : index
    %c0_27 = arith.constant 0 : index
    %c0_28 = arith.constant 0 : index
    %26 = vector.load %arg3[%c6, %c0_27, %c0_28] : memref<9x64x32xf32, #tpu.memory_space<vmem>>, vector<1x64x32xf32>
    %27 = vector.shape_cast %26 : vector<1x64x32xf32> to vector<64x32xf32>
    %cst_29 = arith.constant dense<0.000000e+00> : vector<16x32xf32>
    %28 = tpu.matmul %1, %27, %cst_29 {dimension_numbers = #tpu.dot_dimension_numbers<[1], [0], [0], [1], [0, 0, 1, 1], [], []>} : vector<16x64xf32>, vector<64x32xf32>, vector<16x32xf32> -> vector<16x32xf32>
    %c96 = arith.constant 96 : index
    %c0_30 = arith.constant 0 : index
    %29 = vector.load %arg7[%c96, %c0_30] : memref<144x32xf32, #tpu.memory_space<vmem>>, vector<16x32xf32>
    tpu.vector_store %arg7[%c96, %c0_30], %28 {strides = array<i32>} : memref<144x32xf32, #tpu.memory_space<vmem>>, vector<16x32xf32>,
    %c7 = arith.constant 7 : index
    %c0_31 = arith.constant 0 : index
    %c0_32 = arith.constant 0 : index
    %30 = vector.load %arg3[%c7, %c0_31, %c0_32] : memref<9x64x32xf32, #tpu.memory_space<vmem>>, vector<1x64x32xf32>
    %31 = vector.shape_cast %30 : vector<1x64x32xf32> to vector<64x32xf32>
    %cst_33 = arith.constant dense<0.000000e+00> : vector<16x32xf32>
    %32 = tpu.matmul %1, %31, %cst_33 {dimension_numbers = #tpu.dot_dimension_numbers<[1], [0], [0], [1], [0, 0, 1, 1], [], []>} : vector<16x64xf32>, vector<64x32xf32>, vector<16x32xf32> -> vector<16x32xf32>
    %c112 = arith.constant 112 : index
    %c0_34 = arith.constant 0 : index
    %33 = vector.load %arg7[%c112, %c0_34] : memref<144x32xf32, #tpu.memory_space<vmem>>, vector<16x32xf32>
    tpu.vector_store %arg7[%c112, %c0_34], %32 {strides = array<i32>} : memref<144x32xf32, #tpu.memory_space<vmem>>, vector<16x32xf32>,
    %c8 = arith.constant 8 : index
    %c0_35 = arith.constant 0 : index
    %c0_36 = arith.constant 0 : index
    %34 = vector.load %arg3[%c8, %c0_35, %c0_36] : memref<9x64x32xf32, #tpu.memory_space<vmem>>, vector<1x64x32xf32>
    %35 = vector.shape_cast %34 : vector<1x64x32xf32> to vector<64x32xf32>
    %cst_37 = arith.constant dense<0.000000e+00> : vector<16x32xf32>
    %36 = tpu.matmul %1, %35, %cst_37 {dimension_numbers = #tpu.dot_dimension_numbers<[1], [0], [0], [1], [0, 0, 1, 1], [], []>} : vector<16x64xf32>, vector<64x32xf32>, vector<16x32xf32> -> vector<16x32xf32>
    %c128 = arith.constant 128 : index
    %c0_38 = arith.constant 0 : index
    %37 = vector.load %arg7[%c128, %c0_38] : memref<144x32xf32, #tpu.memory_space<vmem>>, vector<16x32xf32>
    tpu.vector_store %arg7[%c128, %c0_38], %36 {strides = array<i32>} : memref<144x32xf32, #tpu.memory_space<vmem>>, vector<16x32xf32>,
    %c0_39 = arith.constant 0 : index
    %c0_40 = arith.constant 0 : index
    %38 = vector.load %arg4[%c0_39, %c0_40] : memref<16x144xf32, #tpu.memory_space<vmem>>, vector<16x144xf32>
    %c0_41 = arith.constant 0 : index
    %c0_42 = arith.constant 0 : index
    %39 = vector.load %arg7[%c0_41, %c0_42] : memref<144x32xf32, #tpu.memory_space<vmem>>, vector<144x32xf32>
    %cst_43 = arith.constant dense<0.000000e+00> : vector<16x32xf32>
    %40 = tpu.matmul %38, %39, %cst_43 {dimension_numbers = #tpu.dot_dimension_numbers<[1], [0], [0], [1], [0, 0, 1, 1], [], []>} : vector<16x144xf32>, vector<144x32xf32>, vector<16x32xf32> -> vector<16x32xf32>
    %c0_44 = arith.constant 0 : index
    %c0_45 = arith.constant 0 : index
    %41 = vector.load %arg5[%c0_44, %c0_45] : memref<16x32xf32, #tpu.memory_space<vmem>>, vector<16x32xf32>
    %42 = arith.addf %40, %41 : vector<16x32xf32>
    %43 = vector.shape_cast %42 : vector<16x32xf32> to vector<1x16x32xf32>
    %c0_46 = arith.constant 0 : index
    %c0_47 = arith.constant 0 : index
    %c0_48 = arith.constant 0 : index
    %44 = vector.load %arg6[%c0_46, %c0_47, %c0_48] : memref<1x16x32xf32, #tpu.memory_space<vmem>>, vector<1x16x32xf32>
    tpu.vector_store %arg6[%c0_46, %c0_47, %c0_48], %43 {strides = array<i32>} : memref<1x16x32xf32, #tpu.memory_space<vmem>>, vector<1x16x32xf32>,
    return
  }
  func.func @transform_0(%arg0: i32, %arg1: i32) -> (i32, i32, i32) {
    %c0_i32 = arith.constant 0 : i32
    %c0_i32_0 = arith.constant 0 : i32
    %c0_i32_1 = arith.constant 0 : i32
    return %arg0, %c0_i32, %c0_i32_0 : i32, i32, i32
  }
  func.func @transform_1(%arg0: i32, %arg1: i32) -> (i32, i32, i32) {
    %c0_i32 = arith.constant 0 : i32
    %c0_i32_0 = arith.constant 0 : i32
    %c0_i32_1 = arith.constant 0 : i32
    %c0_i32_2 = arith.constant 0 : i32
    return %c0_i32, %c0_i32_0, %c0_i32_1 : i32, i32, i32
  }
  func.func @transform_2(%arg0: i32, %arg1: i32) -> (i32, i32) {
    %c0_i32 = arith.constant 0 : i32
    %c0_i32_0 = arith.constant 0 : i32
    return %arg1, %c0_i32 : i32, i32
  }
  func.func @transform_3(%arg0: i32, %arg1: i32) -> (i32, i32) {
    %c0_i32 = arith.constant 0 : i32
    %c0_i32_0 = arith.constant 0 : i32
    return %arg1, %c0_i32 : i32, i32
  }
  func.func @transform_4(%arg0: i32, %arg1: i32) -> (i32, i32, i32) {
    %c0_i32 = arith.constant 0 : i32
    %c0_i32_0 = arith.constant 0 : i32
    return %arg0, %arg1, %c0_i32 : i32, i32, i32
  }
}

</mosaic_0001>

<llo_original>
// kernel: tpu_custom_call.1
$region0: #{tpu_custom_call.1}
  #allocation0 [shape = 'u32[]', space=smem, size = 0x4, offset = 0x4, fixed_abs, tag = 'smem constant byte address 0x4 - core index']
  #allocation1 [shape = 'u32[144,128]{1,0:T(1,128)}', space=vmem, size = 0x12000, scoped, tag = 'internal scratch']
  #allocation2 [shape = 'f32[144,32]{1,0:T(8,128)}', space=vmem, size = 0x12000, scoped, tag = 'scratch operand']
  %s0 = inlined_call_operand.vmem [shape: f32[2,16,64], index: 0, kind: input, shape index: {}]
  %s1 = inlined_call_operand.vmem [shape: f32[9,64,32], index: 1, kind: input, shape index: {}]
  %s2 = inlined_call_operand.vmem [shape: f32[32,144], index: 2, kind: input, shape index: {}]
  %s3 = inlined_call_operand.vmem [shape: f32[32,32], index: 3, kind: input, shape index: {}]
  %s4 = inlined_call_operand.hbm [shape: f32[2,32,32], index: 4, kind: output, shape index: {}]
  %s5 = sld [smem:[#allocation0]]
  $region49: #{tpu_custom_call.1} parent=0
    _
  %s7 = ssub.s32 1, %s5
  %s8 = scalar_select 0, %s7, %s5
  $region1: #{tpu_custom_call.1} parent=0
    #allocation3 [shape = 'u8[16384]{0}', space=vmem, size = 0x4000, scoped, tag = 'output window, operand 0']
    #allocation4 [shape = 's32[2]{0}', space=sflag, size = 0x8, scoped, tag = 'scoped memory for tpu_custom_call.1']
    %9 = vsyncpa [#allocation4], 0
    %s10 = scalar_lea.sflag [#allocation4], 1
    %11 = vsyncpa %s10, 0
    loop: start=0, step=1, limit=6
    $region2: #{tpu_custom_call.1} parent=1 // loop_pre_header
      _
    $region3: #{tpu_custom_call.1} parent=1 // loop_header
      %s13 = sphi 0, %s17
      %p14 = scmp.ge.s32.totalorder %s13, 6
      %s20 = sphi 0, %s32
      %s21 = sphi 0, %s28
      %s22 = sphi 0, %s20
      %s23 = sphi 0, %s21
      %s24 = sphi 0, %s22
      %s25 = sphi 0, %s23
      %s35 = sphi 0, %s37
      %s38 = sphi 0, %s35
      %s39 = sphi 0, %s38
      %s55 = sphi 0, %s39
      %s59 = sphi 0, %s59
      %s61 = sphi 0, %s59
      %s62 = sphi 0, %s61
      %s76 = sphi 0, %s62
      %s82 = sphi 0, %s84
      %s85 = sphi 0, %s82
      %s86 = sphi 0, %s85
      %s102 = sphi 0, %s86
      %s108 = sphi 0, %s110
      %s111 = sphi 0, %s108
      %s112 = sphi 0, %s111
      %s128 = sphi 0, %s112
      %s136 = sphi 0, %s138
      %s139 = sphi 0, %s136
      %s140 = sphi 0, %s139
      %s156 = sphi 0, %s140
    $region4: #{tpu_custom_call.1} parent=1 // loop_header_branch
      %16 = sbr.rel (%p14) target = $region8
    $region5: #{tpu_custom_call.1} parent=1 // loop_body
      %s18 = ssub.s32 %s13, 1
      %s19 = ssub.s32 %s13, 2
      %s26 = sadd.s32 1, %s21
      %p27 = scmp.ge.s32.totalorder %s26, 2
      %s28 = scalar_select %p27, 0, %s26
      %s29 = sadd.s32 1, %s20
      %s30 = scalar_select %p27, %s29, %s20
      %p31 = scmp.ge.s32.totalorder %s30, 2
      %s32 = scalar_select %p31, 0, %s30
      %s33 = ssub.s32 %s20, %s32
      %p34 = scmp.eq.s32.totalorder %s33, 0
      %s36 = sadd.s32 %s35, 1
      %s37 = scalar_select %p34, %s35, %s36
      %p40 = pneg %p34
      %p41 = scmp.eq.s32.totalorder %s13, 3
      %p42 = por %p40, %p41
      %p43 = scmp.ne.s32.totalorder %s35, %s38
      %p44 = scmp.eq.s32.totalorder %s13, 0
      %p45 = por %p43, %p44
      %p46 = scmp.ne.s32.totalorder %s35, %s38
      %p47 = scmp.eq.s32.totalorder %s18, 3
      %p48 = por %p46, %p47
      %p49 = scmp.ne.s32.totalorder %s38, %s39
      %p50 = scmp.eq.s32.totalorder %s18, 0
      %p51 = por %p49, %p50
      %p52 = scmp.ne.s32.totalorder %s38, %s39
      %p53 = scmp.eq.s32.totalorder %s19, 3
      %p54 = por %p52, %p53
      %p56 = scmp.ne.s32.totalorder %s39, %s55
      %p57 = scmp.eq.s32.totalorder %s19, 0
      %p58 = por %p56, %p57
      %s60 = sadd.s32 %s59, 1
      %p63 = scmp.eq.s32.totalorder %s13, 3
      %p64 = scmp.ne.s32.totalorder %s59, %s61
      %p65 = scmp.eq.s32.totalorder %s13, 0
      %p66 = por %p64, %p65
      %p67 = scmp.ne.s32.totalorder %s59, %s61
      %p68 = scmp.eq.s32.totalorder %s18, 3
      %p69 = por %p67, %p68
      %p70 = scmp.ne.s32.totalorder %s61, %s62
      %p71 = scmp.eq.s32.totalorder %s18, 0
      %p72 = por %p70, %p71
      %p73 = scmp.ne.s32.totalorder %s61, %s62
      %p74 = scmp.eq.s32.totalorder %s19, 3
      %p75 = por %p73, %p74
      %p77 = scmp.ne.s32.totalorder %s62, %s76
      %p78 = scmp.eq.s32.totalorder %s19, 0
      %p79 = por %p77, %p78
      %s80 = ssub.s32 %s21, %s28
      %p81 = scmp.eq.s32.totalorder %s80, 0
      %s83 = sadd.s32 %s82, 1
      %s84 = scalar_select %p81, %s82, %s83
      %p87 = pneg %p81
      %p88 = scmp.eq.s32.totalorder %s13, 3
      %p89 = por %p87, %p88
      %p90 = scmp.ne.s32.totalorder %s82, %s85
      %p91 = scmp.eq.s32.totalorder %s13, 0
      %p92 = por %p90, %p91
      %p93 = scmp.ne.s32.totalorder %s82, %s85
      %p94 = scmp.eq.s32.totalorder %s18, 3
      %p95 = por %p93, %p94
      %p96 = scmp.ne.s32.totalorder %s85, %s86
      %p97 = scmp.eq.s32.totalorder %s18, 0
      %p98 = por %p96, %p97
      %p99 = scmp.ne.s32.totalorder %s85, %s86
      %p100 = scmp.eq.s32.totalorder %s19, 3
      %p101 = por %p99, %p100
      %p103 = scmp.ne.s32.totalorder %s86, %s102
      %p104 = scmp.eq.s32.totalorder %s19, 0
      %p105 = por %p103, %p104
      %s106 = ssub.s32 %s21, %s28
      %p107 = scmp.eq.s32.totalorder %s106, 0
      %s109 = sadd.s32 %s108, 1
      %s110 = scalar_select %p107, %s108, %s109
      %p113 = pneg %p107
      %p114 = scmp.eq.s32.totalorder %s13, 3
      %p115 = por %p113, %p114
      %p116 = scmp.ne.s32.totalorder %s108, %s111
      %p117 = scmp.eq.s32.totalorder %s13, 0
      %p118 = por %p116, %p117
      %p119 = scmp.ne.s32.totalorder %s108, %s111
      %p120 = scmp.eq.s32.totalorder %s18, 3
      %p121 = por %p119, %p120
      %p122 = scmp.ne.s32.totalorder %s111, %s112
      %p123 = scmp.eq.s32.totalorder %s18, 0
      %p124 = por %p122, %p123
      %p125 = scmp.ne.s32.totalorder %s111, %s112
      %p126 = scmp.eq.s32.totalorder %s19, 3
      %p127 = por %p125, %p126
      %p129 = scmp.ne.s32.totalorder %s112, %s128
      %p130 = scmp.eq.s32.totalorder %s19, 0
      %p131 = por %p129, %p130
      %s132 = ssub.s32 %s20, %s32
      %s133 = ssub.s32 %s21, %s28
      %s134 = sor.u32 %s132, %s133
      %p135 = scmp.eq.s32.totalorder %s134, 0
      %s137 = sadd.s32 %s136, 1
      %s138 = scalar_select %p135, %s136, %s137
      %p141 = pneg %p135
      %p142 = scmp.eq.s32.totalorder %s13, 3
      %p143 = por %p141, %p142
      %p144 = scmp.ne.s32.totalorder %s136, %s139
      %p145 = scmp.eq.s32.totalorder %s13, 0
      %p146 = por %p144, %p145
      %p147 = scmp.ne.s32.totalorder %s136, %s139
      %p148 = scmp.eq.s32.totalorder %s18, 3
      %p149 = por %p147, %p148
      %p150 = scmp.ne.s32.totalorder %s139, %s140
      %p151 = scmp.eq.s32.totalorder %s18, 0
      %p152 = por %p150, %p151
      %p153 = scmp.ne.s32.totalorder %s139, %s140
      %p154 = scmp.eq.s32.totalorder %s19, 3
      %p155 = por %p153, %p154
      %p157 = scmp.ne.s32.totalorder %s140, %s156
      %p158 = scmp.eq.s32.totalorder %s19, 0
      %p159 = por %p157, %p158
      %p160 = scmp.le.s32.totalorder 1, %s13
      %p161 = scmp.lt.s32.totalorder %s13, 5
      %p162 = pnand %p160, %p161
      %p163 = pneg %p162
      // Predicated region
      $region9: #{tpu_custom_call.1} parent=5 // pred_check
        _
      $region10: #{tpu_custom_call.1} parent=5 // pred_check_branch
        %165 = sbr.rel (%p162) target = $region12
      $region11: #{tpu_custom_call.1} parent=5 // pred_region
        %s166 = ssub.s32 %s13, 1
        // Predicated region
        $region13: #{tpu_custom_call.1} parent=11 // pred_check
          %p167 = pneg %p72
        $region14: #{tpu_custom_call.1} parent=11 // pred_check_branch
          %169 = sbr.rel (%p167) target = $region16
        $region15: #{tpu_custom_call.1} parent=11 // pred_region
          _
        $region16: #{tpu_custom_call.1} parent=11 // pred_fallthru
          _
      $region12: #{tpu_custom_call.1} parent=5 // pred_fallthru
        _
      %p170 = scmp.lt.s32.totalorder %s13, 4
      // Predicated region
      $region17: #{tpu_custom_call.1} parent=5 // pred_check
        %p171 = pneg %p170
      $region18: #{tpu_custom_call.1} parent=5 // pred_check_branch
        %173 = sbr.rel (%p171) target = $region20
      $region19: #{tpu_custom_call.1} parent=5 // pred_region
        // Predicated region
        $region21: #{tpu_custom_call.1} parent=19 // pred_check
          %p174 = pneg %p45
        $region22: #{tpu_custom_call.1} parent=19 // pred_check_branch
          %176 = sbr.rel (%p174) target = $region24
        $region23: #{tpu_custom_call.1} parent=19 // pred_region
          %p177 = scmp.lt.s32.totalorder %s20, 1
          %s178 = scalar_select %p177, %s20, 1
          %s179 = smul.addr %s178, 2
          %s180 = smul.addr %s179, 8
          %s181 = scalar_lea.vmem %s0, %s180
        $region24: #{tpu_custom_call.1} parent=19 // pred_fallthru
          _
        // Predicated region
        $region25: #{tpu_custom_call.1} parent=19 // pred_check
          %p182 = pneg %p92
        $region26: #{tpu_custom_call.1} parent=19 // pred_check_branch
          %184 = sbr.rel (%p182) target = $region28
        $region27: #{tpu_custom_call.1} parent=19 // pred_region
          %s185 = smul.u32 2, %s21
          %p186 = scmp.lt.s32.totalorder %s185, 3
          %s187 = scalar_select %p186, %s185, 3
          %s188 = smul.addr %s187, 2
          %s189 = smul.addr %s188, 8
          %s190 = scalar_lea.vmem %s2, %s189
          %s191 = smul.u32 2, %s21
        $region28: #{tpu_custom_call.1} parent=19 // pred_fallthru
          _
        // Predicated region
        $region29: #{tpu_custom_call.1} parent=19 // pred_check
          %p192 = pneg %p118
        $region30: #{tpu_custom_call.1} parent=19 // pred_check_branch
          %194 = sbr.rel (%p192) target = $region32
        $region31: #{tpu_custom_call.1} parent=19 // pred_region
          %s195 = smul.u32 2, %s21
          %p196 = scmp.lt.s32.totalorder %s195, 3
          %s197 = scalar_select %p196, %s195, 3
          %s198 = smul.addr %s197, 8
          %s199 = scalar_lea.vmem %s3, %s198
          %s200 = smul.u32 2, %s21
        $region32: #{tpu_custom_call.1} parent=19 // pred_fallthru
          _
      $region20: #{tpu_custom_call.1} parent=5 // pred_fallthru
        _
      %p201 = scmp.le.s32.totalorder 1, %s13
      %p202 = scmp.lt.s32.totalorder %s13, 5
      %p203 = pnand %p201, %p202
      %p204 = pneg %p203
      // Predicated region
      $region33: #{tpu_custom_call.1} parent=5 // pred_check
        _
      $region34: #{tpu_custom_call.1} parent=5 // pred_check_branch
        %206 = sbr.rel (%p203) target = $region36
      $region35: #{tpu_custom_call.1} parent=5 // pred_region
        %s207 = ssub.s32 %s13, 1
        %p208 = scmp.lt.s32.totalorder %s22, 1
        %s209 = scalar_select %p208, %s22, 1
        %s210 = smul.addr %s209, 2
        %s211 = smul.addr %s210, 8
        %s212 = scalar_lea.vmem %s0, %s211
        %p213 = pneg %p51
        %p214 = pneg %p48
        %p215 = pneg %p72
        %p216 = pneg %p69
        %s217 = smul.u32 2, %s23
        %p218 = scmp.lt.s32.totalorder %s217, 3
        %s219 = scalar_select %p218, %s217, 3
        %s220 = smul.addr %s219, 2
        %s221 = smul.addr %s220, 8
        %s222 = scalar_lea.vmem %s2, %s221
        %p223 = pneg %p98
        %p224 = pneg %p95
        %s225 = smul.u32 2, %s23
        %p226 = scmp.lt.s32.totalorder %s225, 3
        %s227 = scalar_select %p226, %s225, 3
        %s228 = smul.addr %s227, 8
        %s229 = scalar_lea.vmem %s3, %s228
        %p230 = pneg %p124
        %p231 = pneg %p121
        %p232 = pneg %p152
        %p233 = pneg %p149
        %s234 = sand.u32 %s139, 1
        %s235 = scalar_lea.sflag [#allocation4], %s234
        %s236 = sand.u32 %s139, 1
        %s237 = smul.addr %s236, 16
        %s238 = scalar_lea.vmem [#allocation3], %s237
        %p239 = scmp.lt.s32.totalorder %s22, 1
        %s240 = scalar_select %p239, %s22, 1
        %s241 = smul.addr %s240, 2
        %s242 = smul.addr %s241, 8
        %s243 = scalar_lea.vmem %s0, %s242
        %s244 = smul.u32 2, %s23
        %p245 = scmp.lt.s32.totalorder %s244, 3
        %s246 = scalar_select %p245, %s244, 3
        %s247 = smul.addr %s246, 2
        %s248 = smul.addr %s247, 8
        %s249 = scalar_lea.vmem %s2, %s248
        %s250 = smul.u32 2, %s23
        %s251 = smul.u32 2, %s23
        %p252 = scmp.lt.s32.totalorder %s251, 3
        %s253 = scalar_select %p252, %s251, 3
        %s254 = smul.addr %s253, 8
        %s255 = scalar_lea.vmem %s3, %s254
        %s256 = smul.u32 2, %s23
        %s257 = smul.u32 2, %s23
        %v258 = vld [vmem:[%s243] sm:$0xff]
        %v259 = vld [vmem:[%s243 + $0x8] sm:$0xff]
        %v260 = vld [vmem:[%s1] sm:$0xff]
        %v261 = vld [vmem:[%s1 + $0x8] sm:$0xff]
        %v262 = vld [vmem:[%s1 + $0x10] sm:$0xff]
        %v263 = vld [vmem:[%s1 + $0x18] sm:$0xff]
        %v264 = vld [vmem:[%s1 + $0x20] sm:$0xff]
        %v265 = vld [vmem:[%s1 + $0x28] sm:$0xff]
        %v266 = vld [vmem:[%s1 + $0x30] sm:$0xff]
        %v267 = vld [vmem:[%s1 + $0x38] sm:$0xff]
        %vm268 = vcmask 523264
        %v270 = vsel %vm268, %v258, 0
        %v273 = vsel %vm268, %v259, 0
        %275 = vmatprep.subr.mxu0 0.0
        %276 = vmatpush1.msra.mxu0 0.0
        %277 = vmatprep.subr.mxu0 0.0
        %278 = vmatpush1.msra.mxu0 0.0
        %279 = vmatprep.subr.mxu0 0.0
        %280 = vmatpush1.msra.mxu0 0.0
        %281 = vmatprep.subr.mxu0 0.0
        %282 = vmatpush1.msra.mxu0 0.0
        %283 = vmatprep.subr.mxu0 0.0
        %284 = vmatpush1.msra.mxu0 0.0
        %285 = vmatprep.subr.mxu0 0.0
        %286 = vmatpush1.msra.mxu0 0.0
        %287 = vmatprep.subr.mxu0 0.0
        %288 = vmatpush1.msra.mxu0 0.0
        %289 = vmatprep.subr.mxu0 0.0
        %290 = vmatpush1.msra.mxu0 0.0
        %291 = vmatprep.subr.mxu0 0.0
        %292 = vmatpush1.msra.mxu0 %v267
        %293 = vmatprep.subr.mxu0 0.0
        %294 = vmatpush1.msra.mxu0 %v266
        %295 = vmatprep.subr.mxu0 0.0
        %296 = vmatpush1.msra.mxu0 %v265
        %297 = vmatprep.subr.mxu0 0.0
        %298 = vmatpush1.msra.mxu0 %v264
        %299 = vmatprep.subr.mxu0 0.0
        %300 = vmatpush1.msra.mxu0 %v263
        %301 = vmatprep.subr.mxu0 0.0
        %302 = vmatpush1.msra.mxu0 %v262
        %303 = vmatprep.subr.mxu0 0.0
        %304 = vmatpush1.msra.mxu0 %v261
        %305 = vmatprep.subr.mxu0 0.0
        %306 = vmatpush1.msra.mxu0 %v260
        %307 = vmatprep.subr.mxu0 0.0
        %308 = vmatpush2.msra.mxu0 0.0
        %309 = vmatprep.subr.mxu0 0.0
        %310 = vmatpush2.msra.mxu0 0.0
        %311 = vmatprep.subr.mxu0 0.0
        %312 = vmatpush2.msra.mxu0 0.0
        %313 = vmatprep.subr.mxu0 0.0
        %314 = vmatpush2.msra.mxu0 0.0
        %315 = vmatprep.subr.mxu0 0.0
        %316 = vmatpush2.msra.mxu0 0.0
        %317 = vmatprep.subr.mxu0 0.0
        %318 = vmatpush2.msra.mxu0 0.0
        %319 = vmatprep.subr.mxu0 0.0
        %320 = vmatpush2.msra.mxu0 0.0
        %321 = vmatprep.subr.mxu0 0.0
        %322 = vmatpush2.msra.mxu0 0.0
        %323 = vmatprep.subr.mxu0 0.0
        %324 = vmatpush2.msra.mxu0 0.0
        %325 = vmatprep.subr.mxu0 0.0
        %326 = vmatpush2.msra.mxu0 0.0
        %327 = vmatprep.subr.mxu0 0.0
        %328 = vmatpush2.msra.mxu0 0.0
        %329 = vmatprep.subr.mxu0 0.0
        %330 = vmatpush2.msra.mxu0 0.0
        %331 = vmatprep.subr.mxu0 0.0
        %332 = vmatpush2.msra.mxu0 0.0
        %333 = vmatprep.subr.mxu0 0.0
        %334 = vmatpush2.msra.mxu0 0.0
        %335 = vmatprep.subr.mxu0 0.0
        %336 = vmatpush2.msra.mxu0 0.0
        %337 = vmatprep.subr.mxu0 0.0
        %338 = vmatpush2.msra.mxu0 0.0
        %339 = vmatprep.mubr.f32.mxu0 0.0
        %340 = vmatmul.mubr.f32.gmra.mxu0 %v270
        %v341 = vpop.f32.mrf.mxu0
        %v342 = vadd.f32 0.0, %v341
        %v343 = vpop.f32.mrf.mxu0
        %344 = vmatprep.mubr.f32.mxu0 0.0
        %345 = vmatmul.mubr.f32.gmra.mxu0 %v273
        %v346 = vpop.f32.mrf.mxu0
        %v347 = vadd.f32 0.0, %v346
        %v348 = vpop.f32.mrf.mxu0
        %349 = vdwg.mxu0
        %vm350 = vcmask 261120
        %351 = vst.msk [vmem:[#allocation2] sm:$0xff] %vm350, %v342
        %352 = vst.msk [vmem:[#allocation2 + $0x8] sm:$0xff] %vm350, %v347
        %s353 = scalar_lea.vmem %s1, 64
        %v354 = vld [vmem:[%s353] sm:$0xff]
        %v355 = vld [vmem:[%s353 + $0x8] sm:$0xff]
        %v356 = vld [vmem:[%s353 + $0x10] sm:$0xff]
        %v357 = vld [vmem:[%s353 + $0x18] sm:$0xff]
        %v358 = vld [vmem:[%s353 + $0x20] sm:$0xff]
        %v359 = vld [vmem:[%s353 + $0x28] sm:$0xff]
        %v360 = vld [vmem:[%s353 + $0x30] sm:$0xff]
        %v361 = vld [vmem:[%s353 + $0x38] sm:$0xff]
        %362 = vmatprep.subr.mxu0 0.0
        %363 = vmatpush1.msra.mxu0 0.0
        %364 = vmatprep.subr.mxu0 0.0
        %365 = vmatpush1.msra.mxu0 0.0
        %366 = vmatprep.subr.mxu0 0.0
        %367 = vmatpush1.msra.mxu0 0.0
        %368 = vmatprep.subr.mxu0 0.0
        %369 = vmatpush1.msra.mxu0 0.0
        %370 = vmatprep.subr.mxu0 0.0
        %371 = vmatpush1.msra.mxu0 0.0
        %372 = vmatprep.subr.mxu0 0.0
        %373 = vmatpush1.msra.mxu0 0.0
        %374 = vmatprep.subr.mxu0 0.0
        %375 = vmatpush1.msra.mxu0 0.0
        %376 = vmatprep.subr.mxu0 0.0
        %377 = vmatpush1.msra.mxu0 0.0
        %378 = vmatprep.subr.mxu0 0.0
        %379 = vmatpush1.msra.mxu0 %v361
        %380 = vmatprep.subr.mxu0 0.0
        %381 = vmatpush1.msra.mxu0 %v360
        %382 = vmatprep.subr.mxu0 0.0
        %383 = vmatpush1.msra.mxu0 %v359
        %384 = vmatprep.subr.mxu0 0.0
        %385 = vmatpush1.msra.mxu0 %v358
        %386 = vmatprep.subr.mxu0 0.0
        %387 = vmatpush1.msra.mxu0 %v357
        %388 = vmatprep.subr.mxu0 0.0
        %389 = vmatpush1.msra.mxu0 %v356
        %390 = vmatprep.subr.mxu0 0.0
        %391 = vmatpush1.msra.mxu0 %v355
        %392 = vmatprep.subr.mxu0 0.0
        %393 = vmatpush1.msra.mxu0 %v354
        %394 = vmatprep.subr.mxu0 0.0
        %395 = vmatpush2.msra.mxu0 0.0
        %396 = vmatprep.subr.mxu0 0.0
        %397 = vmatpush2.msra.mxu0 0.0
        %398 = vmatprep.subr.mxu0 0.0
        %399 = vmatpush2.msra.mxu0 0.0
        %400 = vmatprep.subr.mxu0 0.0
        %401 = vmatpush2.msra.mxu0 0.0
        %402 = vmatprep.subr.mxu0 0.0
        %403 = vmatpush2.msra.mxu0 0.0
        %404 = vmatprep.subr.mxu0 0.0
        %405 = vmatpush2.msra.mxu0 0.0
        %406 = vmatprep.subr.mxu0 0.0
        %407 = vmatpush2.msra.mxu0 0.0
        %408 = vmatprep.subr.mxu0 0.0
        %409 = vmatpush2.msra.mxu0 0.0
        %410 = vmatprep.subr.mxu0 0.0
        %411 = vmatpush2.msra.mxu0 0.0
        %412 = vmatprep.subr.mxu0 0.0
        %413 = vmatpush2.msra.mxu0 0.0
        %414 = vmatprep.subr.mxu0 0.0
        %415 = vmatpush2.msra.mxu0 0.0
        %416 = vmatprep.subr.mxu0 0.0
        %417 = vmatpush2.msra.mxu0 0.0
        %418 = vmatprep.subr.mxu0 0.0
        %419 = vmatpush2.msra.mxu0 0.0
        %420 = vmatprep.subr.mxu0 0.0
        %421 = vmatpush2.msra.mxu0 0.0
        %422 = vmatprep.subr.mxu0 0.0
        %423 = vmatpush2.msra.mxu0 0.0
        %424 = vmatprep.subr.mxu0 0.0
        %425 = vmatpush2.msra.mxu0 0.0
        %426 = vmatprep.mubr.f32.mxu0 0.0
        %427 = vmatmul.mubr.f32.gmra.mxu0 %v270
        %v428 = vpop.f32.mrf.mxu0
        %v429 = vadd.f32 0.0, %v428
        %v430 = vpop.f32.mrf.mxu0
        %431 = vmatprep.mubr.f32.mxu0 0.0
        %432 = vmatmul.mubr.f32.gmra.mxu0 %v273
        %v433 = vpop.f32.mrf.mxu0
        %v434 = vadd.f32 0.0, %v433
        %v435 = vpop.f32.mrf.mxu0
        %436 = vdwg.mxu0
        %437 = vst.msk [vmem:[#allocation2 + $0x10] sm:$0xff] %vm350, %v429
        %438 = vst.msk [vmem:[#allocation2 + $0x18] sm:$0xff] %vm350, %v434
        %s439 = scalar_lea.vmem %s1, 128
        %v440 = vld [vmem:[%s439] sm:$0xff]
        %v441 = vld [vmem:[%s439 + $0x8] sm:$0xff]
        %v442 = vld [vmem:[%s439 + $0x10] sm:$0xff]
        %v443 = vld [vmem:[%s439 + $0x18] sm:$0xff]
        %v444 = vld [vmem:[%s439 + $0x20] sm:$0xff]
        %v445 = vld [vmem:[%s439 + $0x28] sm:$0xff]
        %v446 = vld [vmem:[%s439 + $0x30] sm:$0xff]
        %v447 = vld [vmem:[%s439 + $0x38] sm:$0xff]
        %448 = vmatprep.subr.mxu0 0.0
        %449 = vmatpush1.msra.mxu0 0.0
        %450 = vmatprep.subr.mxu0 0.0
        %451 = vmatpush1.msra.mxu0 0.0
        %452 = vmatprep.subr.mxu0 0.0
        %453 = vmatpush1.msra.mxu0 0.0
        %454 = vmatprep.subr.mxu0 0.0
        %455 = vmatpush1.msra.mxu0 0.0
        %456 = vmatprep.subr.mxu0 0.0
        %457 = vmatpush1.msra.mxu0 0.0
        %458 = vmatprep.subr.mxu0 0.0
        %459 = vmatpush1.msra.mxu0 0.0
        %460 = vmatprep.subr.mxu0 0.0
        %461 = vmatpush1.msra.mxu0 0.0
        %462 = vmatprep.subr.mxu0 0.0
        %463 = vmatpush1.msra.mxu0 0.0
        %464 = vmatprep.subr.mxu0 0.0
        %465 = vmatpush1.msra.mxu0 %v447
        %466 = vmatprep.subr.mxu0 0.0
        %467 = vmatpush1.msra.mxu0 %v446
        %468 = vmatprep.subr.mxu0 0.0
        %469 = vmatpush1.msra.mxu0 %v445
        %470 = vmatprep.subr.mxu0 0.0
        %471 = vmatpush1.msra.mxu0 %v444
        %472 = vmatprep.subr.mxu0 0.0
        %473 = vmatpush1.msra.mxu0 %v443
        %474 = vmatprep.subr.mxu0 0.0
        %475 = vmatpush1.msra.mxu0 %v442
        %476 = vmatprep.subr.mxu0 0.0
        %477 = vmatpush1.msra.mxu0 %v441
        %478 = vmatprep.subr.mxu0 0.0
        %479 = vmatpush1.msra.mxu0 %v440
        %480 = vmatprep.subr.mxu0 0.0
        %481 = vmatpush2.msra.mxu0 0.0
        %482 = vmatprep.subr.mxu0 0.0
        %483 = vmatpush2.msra.mxu0 0.0
        %484 = vmatprep.subr.mxu0 0.0
        %485 = vmatpush2.msra.mxu0 0.0
        %486 = vmatprep.subr.mxu0 0.0
        %487 = vmatpush2.msra.mxu0 0.0
        %488 = vmatprep.subr.mxu0 0.0
        %489 = vmatpush2.msra.mxu0 0.0
        %490 = vmatprep.subr.mxu0 0.0
        %491 = vmatpush2.msra.mxu0 0.0
        %492 = vmatprep.subr.mxu0 0.0
        %493 = vmatpush2.msra.mxu0 0.0
        %494 = vmatprep.subr.mxu0 0.0
        %495 = vmatpush2.msra.mxu0 0.0
        %496 = vmatprep.subr.mxu0 0.0
        %497 = vmatpush2.msra.mxu0 0.0
        %498 = vmatprep.subr.mxu0 0.0
        %499 = vmatpush2.msra.mxu0 0.0
        %500 = vmatprep.subr.mxu0 0.0
        %501 = vmatpush2.msra.mxu0 0.0
        %502 = vmatprep.subr.mxu0 0.0
        %503 = vmatpush2.msra.mxu0 0.0
        %504 = vmatprep.subr.mxu0 0.0
        %505 = vmatpush2.msra.mxu0 0.0
        %506 = vmatprep.subr.mxu0 0.0
        %507 = vmatpush2.msra.mxu0 0.0
        %508 = vmatprep.subr.mxu0 0.0
        %509 = vmatpush2.msra.mxu0 0.0
        %510 = vmatprep.subr.mxu0 0.0
        %511 = vmatpush2.msra.mxu0 0.0
        %512 = vmatprep.mubr.f32.mxu0 0.0
        %513 = vmatmul.mubr.f32.gmra.mxu0 %v270
        %v514 = vpop.f32.mrf.mxu0
        %v515 = vadd.f32 0.0, %v514
        %v516 = vpop.f32.mrf.mxu0
        %517 = vmatprep.mubr.f32.mxu0 0.0
        %518 = vmatmul.mubr.f32.gmra.mxu0 %v273
        %v519 = vpop.f32.mrf.mxu0
        %v520 = vadd.f32 0.0, %v519
        %v521 = vpop.f32.mrf.mxu0
        %522 = vdwg.mxu0
        %523 = vst.msk [vmem:[#allocation2 + $0x20] sm:$0xff] %vm350, %v515
        %524 = vst.msk [vmem:[#allocation2 + $0x28] sm:$0xff] %vm350, %v520
        %s525 = scalar_lea.vmem %s1, 192
        %v526 = vld [vmem:[%s525] sm:$0xff]
        %v527 = vld [vmem:[%s525 + $0x8] sm:$0xff]
        %v528 = vld [vmem:[%s525 + $0x10] sm:$0xff]
        %v529 = vld [vmem:[%s525 + $0x18] sm:$0xff]
        %v530 = vld [vmem:[%s525 + $0x20] sm:$0xff]
        %v531 = vld [vmem:[%s525 + $0x28] sm:$0xff]
        %v532 = vld [vmem:[%s525 + $0x30] sm:$0xff]
        %v533 = vld [vmem:[%s525 + $0x38] sm:$0xff]
        %534 = vmatprep.subr.mxu0 0.0
        %535 = vmatpush1.msra.mxu0 0.0
        %536 = vmatprep.subr.mxu0 0.0
        %537 = vmatpush1.msra.mxu0 0.0
        %538 = vmatprep.subr.mxu0 0.0
        %539 = vmatpush1.msra.mxu0 0.0
        %540 = vmatprep.subr.mxu0 0.0
        %541 = vmatpush1.msra.mxu0 0.0
        %542 = vmatprep.subr.mxu0 0.0
        %543 = vmatpush1.msra.mxu0 0.0
        %544 = vmatprep.subr.mxu0 0.0
        %545 = vmatpush1.msra.mxu0 0.0
        %546 = vmatprep.subr.mxu0 0.0
        %547 = vmatpush1.msra.mxu0 0.0
        %548 = vmatprep.subr.mxu0 0.0
        %549 = vmatpush1.msra.mxu0 0.0
        %550 = vmatprep.subr.mxu0 0.0
        %551 = vmatpush1.msra.mxu0 %v533
        %552 = vmatprep.subr.mxu0 0.0
        %553 = vmatpush1.msra.mxu0 %v532
        %554 = vmatprep.subr.mxu0 0.0
        %555 = vmatpush1.msra.mxu0 %v531
        %556 = vmatprep.subr.mxu0 0.0
        %557 = vmatpush1.msra.mxu0 %v530
        %558 = vmatprep.subr.mxu0 0.0
        %559 = vmatpush1.msra.mxu0 %v529
        %560 = vmatprep.subr.mxu0 0.0
        %561 = vmatpush1.msra.mxu0 %v528
        %562 = vmatprep.subr.mxu0 0.0
        %563 = vmatpush1.msra.mxu0 %v527
        %564 = vmatprep.subr.mxu0 0.0
        %565 = vmatpush1.msra.mxu0 %v526
        %566 = vmatprep.subr.mxu0 0.0
        %567 = vmatpush2.msra.mxu0 0.0
        %568 = vmatprep.subr.mxu0 0.0
        %569 = vmatpush2.msra.mxu0 0.0
        %570 = vmatprep.subr.mxu0 0.0
        %571 = vmatpush2.msra.mxu0 0.0
        %572 = vmatprep.subr.mxu0 0.0
        %573 = vmatpush2.msra.mxu0 0.0
        %574 = vmatprep.subr.mxu0 0.0
        %575 = vmatpush2.msra.mxu0 0.0
        %576 = vmatprep.subr.mxu0 0.0
        %577 = vmatpush2.msra.mxu0 0.0
        %578 = vmatprep.subr.mxu0 0.0
        %579 = vmatpush2.msra.mxu0 0.0
        %580 = vmatprep.subr.mxu0 0.0
        %581 = vmatpush2.msra.mxu0 0.0
        %582 = vmatprep.subr.mxu0 0.0
        %583 = vmatpush2.msra.mxu0 0.0
        %584 = vmatprep.subr.mxu0 0.0
        %585 = vmatpush2.msra.mxu0 0.0
        %586 = vmatprep.subr.mxu0 0.0
        %587 = vmatpush2.msra.mxu0 0.0
        %588 = vmatprep.subr.mxu0 0.0
        %589 = vmatpush2.msra.mxu0 0.0
        %590 = vmatprep.subr.mxu0 0.0
        %591 = vmatpush2.msra.mxu0 0.0
        %592 = vmatprep.subr.mxu0 0.0
        %593 = vmatpush2.msra.mxu0 0.0
        %594 = vmatprep.subr.mxu0 0.0
        %595 = vmatpush2.msra.mxu0 0.0
        %596 = vmatprep.subr.mxu0 0.0
        %597 = vmatpush2.msra.mxu0 0.0
        %598 = vmatprep.mubr.f32.mxu0 0.0
        %599 = vmatmul.mubr.f32.gmra.mxu0 %v270
        %v600 = vpop.f32.mrf.mxu0
        %v601 = vadd.f32 0.0, %v600
        %v602 = vpop.f32.mrf.mxu0
        %603 = vmatprep.mubr.f32.mxu0 0.0
        %604 = vmatmul.mubr.f32.gmra.mxu0 %v273
        %v605 = vpop.f32.mrf.mxu0
        %v606 = vadd.f32 0.0, %v605
        %v607 = vpop.f32.mrf.mxu0
        %608 = vdwg.mxu0
        %609 = vst.msk [vmem:[#allocation2 + $0x30] sm:$0xff] %vm350, %v601
        %610 = vst.msk [vmem:[#allocation2 + $0x38] sm:$0xff] %vm350, %v606
        %s611 = scalar_lea.vmem %s1, 256
        %v612 = vld [vmem:[%s611] sm:$0xff]
        %v613 = vld [vmem:[%s611 + $0x8] sm:$0xff]
        %v614 = vld [vmem:[%s611 + $0x10] sm:$0xff]
        %v615 = vld [vmem:[%s611 + $0x18] sm:$0xff]
        %v616 = vld [vmem:[%s611 + $0x20] sm:$0xff]
        %v617 = vld [vmem:[%s611 + $0x28] sm:$0xff]
        %v618 = vld [vmem:[%s611 + $0x30] sm:$0xff]
        %v619 = vld [vmem:[%s611 + $0x38] sm:$0xff]
        %620 = vmatprep.subr.mxu0 0.0
        %621 = vmatpush1.msra.mxu0 0.0
        %622 = vmatprep.subr.mxu0 0.0
        %623 = vmatpush1.msra.mxu0 0.0
        %624 = vmatprep.subr.mxu0 0.0
        %625 = vmatpush1.msra.mxu0 0.0
        %626 = vmatprep.subr.mxu0 0.0
        %627 = vmatpush1.msra.mxu0 0.0
        %628 = vmatprep.subr.mxu0 0.0
        %629 = vmatpush1.msra.mxu0 0.0
        %630 = vmatprep.subr.mxu0 0.0
        %631 = vmatpush1.msra.mxu0 0.0
        %632 = vmatprep.subr.mxu0 0.0
        %633 = vmatpush1.msra.mxu0 0.0
        %634 = vmatprep.subr.mxu0 0.0
        %635 = vmatpush1.msra.mxu0 0.0
        %636 = vmatprep.subr.mxu0 0.0
        %637 = vmatpush1.msra.mxu0 %v619
        %638 = vmatprep.subr.mxu0 0.0
        %639 = vmatpush1.msra.mxu0 %v618
        %640 = vmatprep.subr.mxu0 0.0
        %641 = vmatpush1.msra.mxu0 %v617
        %642 = vmatprep.subr.mxu0 0.0
        %643 = vmatpush1.msra.mxu0 %v616
        %644 = vmatprep.subr.mxu0 0.0
        %645 = vmatpush1.msra.mxu0 %v615
        %646 = vmatprep.subr.mxu0 0.0
        %647 = vmatpush1.msra.mxu0 %v614
        %648 = vmatprep.subr.mxu0 0.0
        %649 = vmatpush1.msra.mxu0 %v613
        %650 = vmatprep.subr.mxu0 0.0
        %651 = vmatpush1.msra.mxu0 %v612
        %652 = vmatprep.subr.mxu0 0.0
        %653 = vmatpush2.msra.mxu0 0.0
        %654 = vmatprep.subr.mxu0 0.0
        %655 = vmatpush2.msra.mxu0 0.0
        %656 = vmatprep.subr.mxu0 0.0
        %657 = vmatpush2.msra.mxu0 0.0
        %658 = vmatprep.subr.mxu0 0.0
        %659 = vmatpush2.msra.mxu0 0.0
        %660 = vmatprep.subr.mxu0 0.0
        %661 = vmatpush2.msra.mxu0 0.0
        %662 = vmatprep.subr.mxu0 0.0
        %663 = vmatpush2.msra.mxu0 0.0
        %664 = vmatprep.subr.mxu0 0.0
        %665 = vmatpush2.msra.mxu0 0.0
        %666 = vmatprep.subr.mxu0 0.0
        %667 = vmatpush2.msra.mxu0 0.0
        %668 = vmatprep.subr.mxu0 0.0
        %669 = vmatpush2.msra.mxu0 0.0
        %670 = vmatprep.subr.mxu0 0.0
        %671 = vmatpush2.msra.mxu0 0.0
        %672 = vmatprep.subr.mxu0 0.0
        %673 = vmatpush2.msra.mxu0 0.0
        %674 = vmatprep.subr.mxu0 0.0
        %675 = vmatpush2.msra.mxu0 0.0
        %676 = vmatprep.subr.mxu0 0.0
        %677 = vmatpush2.msra.mxu0 0.0
        %678 = vmatprep.subr.mxu0 0.0
        %679 = vmatpush2.msra.mxu0 0.0
        %680 = vmatprep.subr.mxu0 0.0
        %681 = vmatpush2.msra.mxu0 0.0
        %682 = vmatprep.subr.mxu0 0.0
        %683 = vmatpush2.msra.mxu0 0.0
        %684 = vmatprep.mubr.f32.mxu0 0.0
        %685 = vmatmul.mubr.f32.gmra.mxu0 %v270
        %v686 = vpop.f32.mrf.mxu0
        %v687 = vadd.f32 0.0, %v686
        %v688 = vpop.f32.mrf.mxu0
        %689 = vmatprep.mubr.f32.mxu0 0.0
        %690 = vmatmul.mubr.f32.gmra.mxu0 %v273
        %v691 = vpop.f32.mrf.mxu0
        %v692 = vadd.f32 0.0, %v691
        %v693 = vpop.f32.mrf.mxu0
        %694 = vdwg.mxu0
        %695 = vst.msk [vmem:[#allocation2 + $0x40] sm:$0xff] %vm350, %v687
        %696 = vst.msk [vmem:[#allocation2 + $0x48] sm:$0xff] %vm350, %v692
        %s697 = scalar_lea.vmem %s1, 320
        %v698 = vld [vmem:[%s697] sm:$0xff]
        %v699 = vld [vmem:[%s697 + $0x8] sm:$0xff]
        %v700 = vld [vmem:[%s697 + $0x10] sm:$0xff]
        %v701 = vld [vmem:[%s697 + $0x18] sm:$0xff]
        %v702 = vld [vmem:[%s697 + $0x20] sm:$0xff]
        %v703 = vld [vmem:[%s697 + $0x28] sm:$0xff]
        %v704 = vld [vmem:[%s697 + $0x30] sm:$0xff]
        %v705 = vld [vmem:[%s697 + $0x38] sm:$0xff]
        %706 = vmatprep.subr.mxu0 0.0
        %707 = vmatpush1.msra.mxu0 0.0
        %708 = vmatprep.subr.mxu0 0.0
        %709 = vmatpush1.msra.mxu0 0.0
        %710 = vmatprep.subr.mxu0 0.0
        %711 = vmatpush1.msra.mxu0 0.0
        %712 = vmatprep.subr.mxu0 0.0
        %713 = vmatpush1.msra.mxu0 0.0
        %714 = vmatprep.subr.mxu0 0.0
        %715 = vmatpush1.msra.mxu0 0.0
        %716 = vmatprep.subr.mxu0 0.0
        %717 = vmatpush1.msra.mxu0 0.0
        %718 = vmatprep.subr.mxu0 0.0
        %719 = vmatpush1.msra.mxu0 0.0
        %720 = vmatprep.subr.mxu0 0.0
        %721 = vmatpush1.msra.mxu0 0.0
        %722 = vmatprep.subr.mxu0 0.0
        %723 = vmatpush1.msra.mxu0 %v705
        %724 = vmatprep.subr.mxu0 0.0
        %725 = vmatpush1.msra.mxu0 %v704
        %726 = vmatprep.subr.mxu0 0.0
        %727 = vmatpush1.msra.mxu0 %v703
        %728 = vmatprep.subr.mxu0 0.0
        %729 = vmatpush1.msra.mxu0 %v702
        %730 = vmatprep.subr.mxu0 0.0
        %731 = vmatpush1.msra.mxu0 %v701
        %732 = vmatprep.subr.mxu0 0.0
        %733 = vmatpush1.msra.mxu0 %v700
        %734 = vmatprep.subr.mxu0 0.0
        %735 = vmatpush1.msra.mxu0 %v699
        %736 = vmatprep.subr.mxu0 0.0
        %737 = vmatpush1.msra.mxu0 %v698
        %738 = vmatprep.subr.mxu0 0.0
        %739 = vmatpush2.msra.mxu0 0.0
        %740 = vmatprep.subr.mxu0 0.0
        %741 = vmatpush2.msra.mxu0 0.0
        %742 = vmatprep.subr.mxu0 0.0
        %743 = vmatpush2.msra.mxu0 0.0
        %744 = vmatprep.subr.mxu0 0.0
        %745 = vmatpush2.msra.mxu0 0.0
        %746 = vmatprep.subr.mxu0 0.0
        %747 = vmatpush2.msra.mxu0 0.0
        %748 = vmatprep.subr.mxu0 0.0
        %749 = vmatpush2.msra.mxu0 0.0
        %750 = vmatprep.subr.mxu0 0.0
        %751 = vmatpush2.msra.mxu0 0.0
        %752 = vmatprep.subr.mxu0 0.0
        %753 = vmatpush2.msra.mxu0 0.0
        %754 = vmatprep.subr.mxu0 0.0
        %755 = vmatpush2.msra.mxu0 0.0
        %756 = vmatprep.subr.mxu0 0.0
        %757 = vmatpush2.msra.mxu0 0.0
        %758 = vmatprep.subr.mxu0 0.0
        %759 = vmatpush2.msra.mxu0 0.0
        %760 = vmatprep.subr.mxu0 0.0
        %761 = vmatpush2.msra.mxu0 0.0
        %762 = vmatprep.subr.mxu0 0.0
        %763 = vmatpush2.msra.mxu0 0.0
        %764 = vmatprep.subr.mxu0 0.0
        %765 = vmatpush2.msra.mxu0 0.0
        %766 = vmatprep.subr.mxu0 0.0
        %767 = vmatpush2.msra.mxu0 0.0
        %768 = vmatprep.subr.mxu0 0.0
        %769 = vmatpush2.msra.mxu0 0.0
        %770 = vmatprep.mubr.f32.mxu0 0.0
        %771 = vmatmul.mubr.f32.gmra.mxu0 %v270
        %v772 = vpop.f32.mrf.mxu0
        %v773 = vadd.f32 0.0, %v772
        %v774 = vpop.f32.mrf.mxu0
        %775 = vmatprep.mubr.f32.mxu0 0.0
        %776 = vmatmul.mubr.f32.gmra.mxu0 %v273
        %v777 = vpop.f32.mrf.mxu0
        %v778 = vadd.f32 0.0, %v777
        %v779 = vpop.f32.mrf.mxu0
        %780 = vdwg.mxu0
        %781 = vst.msk [vmem:[#allocation2 + $0x50] sm:$0xff] %vm350, %v773
        %782 = vst.msk [vmem:[#allocation2 + $0x58] sm:$0xff] %vm350, %v778
        %s783 = scalar_lea.vmem %s1, 384
        %v784 = vld [vmem:[%s783] sm:$0xff]
        %v785 = vld [vmem:[%s783 + $0x8] sm:$0xff]
        %v786 = vld [vmem:[%s783 + $0x10] sm:$0xff]
        %v787 = vld [vmem:[%s783 + $0x18] sm:$0xff]
        %v788 = vld [vmem:[%s783 + $0x20] sm:$0xff]
        %v789 = vld [vmem:[%s783 + $0x28] sm:$0xff]
        %v790 = vld [vmem:[%s783 + $0x30] sm:$0xff]
        %v791 = vld [vmem:[%s783 + $0x38] sm:$0xff]
        %792 = vmatprep.subr.mxu0 0.0
        %793 = vmatpush1.msra.mxu0 0.0
        %794 = vmatprep.subr.mxu0 0.0
        %795 = vmatpush1.msra.mxu0 0.0
        %796 = vmatprep.subr.mxu0 0.0
        %797 = vmatpush1.msra.mxu0 0.0
        %798 = vmatprep.subr.mxu0 0.0
        %799 = vmatpush1.msra.mxu0 0.0
        %800 = vmatprep.subr.mxu0 0.0
        %801 = vmatpush1.msra.mxu0 0.0
        %802 = vmatprep.subr.mxu0 0.0
        %803 = vmatpush1.msra.mxu0 0.0
        %804 = vmatprep.subr.mxu0 0.0
        %805 = vmatpush1.msra.mxu0 0.0
        %806 = vmatprep.subr.mxu0 0.0
        %807 = vmatpush1.msra.mxu0 0.0
        %808 = vmatprep.subr.mxu0 0.0
        %809 = vmatpush1.msra.mxu0 %v791
        %810 = vmatprep.subr.mxu0 0.0
        %811 = vmatpush1.msra.mxu0 %v790
        %812 = vmatprep.subr.mxu0 0.0
        %813 = vmatpush1.msra.mxu0 %v789
        %814 = vmatprep.subr.mxu0 0.0
        %815 = vmatpush1.msra.mxu0 %v788
        %816 = vmatprep.subr.mxu0 0.0
        %817 = vmatpush1.msra.mxu0 %v787
        %818 = vmatprep.subr.mxu0 0.0
        %819 = vmatpush1.msra.mxu0 %v786
        %820 = vmatprep.subr.mxu0 0.0
        %821 = vmatpush1.msra.mxu0 %v785
        %822 = vmatprep.subr.mxu0 0.0
        %823 = vmatpush1.msra.mxu0 %v784
        %824 = vmatprep.subr.mxu0 0.0
        %825 = vmatpush2.msra.mxu0 0.0
        %826 = vmatprep.subr.mxu0 0.0
        %827 = vmatpush2.msra.mxu0 0.0
        %828 = vmatprep.subr.mxu0 0.0
        %829 = vmatpush2.msra.mxu0 0.0
        %830 = vmatprep.subr.mxu0 0.0
        %831 = vmatpush2.msra.mxu0 0.0
        %832 = vmatprep.subr.mxu0 0.0
        %833 = vmatpush2.msra.mxu0 0.0
        %834 = vmatprep.subr.mxu0 0.0
        %835 = vmatpush2.msra.mxu0 0.0
        %836 = vmatprep.subr.mxu0 0.0
        %837 = vmatpush2.msra.mxu0 0.0
        %838 = vmatprep.subr.mxu0 0.0
        %839 = vmatpush2.msra.mxu0 0.0
        %840 = vmatprep.subr.mxu0 0.0
        %841 = vmatpush2.msra.mxu0 0.0
        %842 = vmatprep.subr.mxu0 0.0
        %843 = vmatpush2.msra.mxu0 0.0
        %844 = vmatprep.subr.mxu0 0.0
        %845 = vmatpush2.msra.mxu0 0.0
        %846 = vmatprep.subr.mxu0 0.0
        %847 = vmatpush2.msra.mxu0 0.0
        %848 = vmatprep.subr.mxu0 0.0
        %849 = vmatpush2.msra.mxu0 0.0
        %850 = vmatprep.subr.mxu0 0.0
        %851 = vmatpush2.msra.mxu0 0.0
        %852 = vmatprep.subr.mxu0 0.0
        %853 = vmatpush2.msra.mxu0 0.0
        %854 = vmatprep.subr.mxu0 0.0
        %855 = vmatpush2.msra.mxu0 0.0
        %856 = vmatprep.mubr.f32.mxu0 0.0
        %857 = vmatmul.mubr.f32.gmra.mxu0 %v270
        %v858 = vpop.f32.mrf.mxu0
        %v859 = vadd.f32 0.0, %v858
        %v860 = vpop.f32.mrf.mxu0
        %861 = vmatprep.mubr.f32.mxu0 0.0
        %862 = vmatmul.mubr.f32.gmra.mxu0 %v273
        %v863 = vpop.f32.mrf.mxu0
        %v864 = vadd.f32 0.0, %v863
        %v865 = vpop.f32.mrf.mxu0
        %866 = vdwg.mxu0
        %867 = vst.msk [vmem:[#allocation2 + $0x60] sm:$0xff] %vm350, %v859
        %868 = vst.msk [vmem:[#allocation2 + $0x68] sm:$0xff] %vm350, %v864
        %s869 = scalar_lea.vmem %s1, 448
        %v870 = vld [vmem:[%s869] sm:$0xff]
        %v871 = vld [vmem:[%s869 + $0x8] sm:$0xff]
        %v872 = vld [vmem:[%s869 + $0x10] sm:$0xff]
        %v873 = vld [vmem:[%s869 + $0x18] sm:$0xff]
        %v874 = vld [vmem:[%s869 + $0x20] sm:$0xff]
        %v875 = vld [vmem:[%s869 + $0x28] sm:$0xff]
        %v876 = vld [vmem:[%s869 + $0x30] sm:$0xff]
        %v877 = vld [vmem:[%s869 + $0x38] sm:$0xff]
        %878 = vmatprep.subr.mxu0 0.0
        %879 = vmatpush1.msra.mxu0 0.0
        %880 = vmatprep.subr.mxu0 0.0
        %881 = vmatpush1.msra.mxu0 0.0
        %882 = vmatprep.subr.mxu0 0.0
        %883 = vmatpush1.msra.mxu0 0.0
        %884 = vmatprep.subr.mxu0 0.0
        %885 = vmatpush1.msra.mxu0 0.0
        %886 = vmatprep.subr.mxu0 0.0
        %887 = vmatpush1.msra.mxu0 0.0
        %888 = vmatprep.subr.mxu0 0.0
        %889 = vmatpush1.msra.mxu0 0.0
        %890 = vmatprep.subr.mxu0 0.0
        %891 = vmatpush1.msra.mxu0 0.0
        %892 = vmatprep.subr.mxu0 0.0
        %893 = vmatpush1.msra.mxu0 0.0
        %894 = vmatprep.subr.mxu0 0.0
        %895 = vmatpush1.msra.mxu0 %v877
        %896 = vmatprep.subr.mxu0 0.0
        %897 = vmatpush1.msra.mxu0 %v876
        %898 = vmatprep.subr.mxu0 0.0
        %899 = vmatpush1.msra.mxu0 %v875
        %900 = vmatprep.subr.mxu0 0.0
        %901 = vmatpush1.msra.mxu0 %v874
        %902 = vmatprep.subr.mxu0 0.0
        %903 = vmatpush1.msra.mxu0 %v873
        %904 = vmatprep.subr.mxu0 0.0
        %905 = vmatpush1.msra.mxu0 %v872
        %906 = vmatprep.subr.mxu0 0.0
        %907 = vmatpush1.msra.mxu0 %v871
        %908 = vmatprep.subr.mxu0 0.0
        %909 = vmatpush1.msra.mxu0 %v870
        %910 = vmatprep.subr.mxu0 0.0
        %911 = vmatpush2.msra.mxu0 0.0
        %912 = vmatprep.subr.mxu0 0.0
        %913 = vmatpush2.msra.mxu0 0.0
        %914 = vmatprep.subr.mxu0 0.0
        %915 = vmatpush2.msra.mxu0 0.0
        %916 = vmatprep.subr.mxu0 0.0
        %917 = vmatpush2.msra.mxu0 0.0
        %918 = vmatprep.subr.mxu0 0.0
        %919 = vmatpush2.msra.mxu0 0.0
        %920 = vmatprep.subr.mxu0 0.0
        %921 = vmatpush2.msra.mxu0 0.0
        %922 = vmatprep.subr.mxu0 0.0
        %923 = vmatpush2.msra.mxu0 0.0
        %924 = vmatprep.subr.mxu0 0.0
        %925 = vmatpush2.msra.mxu0 0.0
        %926 = vmatprep.subr.mxu0 0.0
        %927 = vmatpush2.msra.mxu0 0.0
        %928 = vmatprep.subr.mxu0 0.0
        %929 = vmatpush2.msra.mxu0 0.0
        %930 = vmatprep.subr.mxu0 0.0
        %931 = vmatpush2.msra.mxu0 0.0
        %932 = vmatprep.subr.mxu0 0.0
        %933 = vmatpush2.msra.mxu0 0.0
        %934 = vmatprep.subr.mxu0 0.0
        %935 = vmatpush2.msra.mxu0 0.0
        %936 = vmatprep.subr.mxu0 0.0
        %937 = vmatpush2.msra.mxu0 0.0
        %938 = vmatprep.subr.mxu0 0.0
        %939 = vmatpush2.msra.mxu0 0.0
        %940 = vmatprep.subr.mxu0 0.0
        %941 = vmatpush2.msra.mxu0 0.0
        %942 = vmatprep.mubr.f32.mxu0 0.0
        %943 = vmatmul.mubr.f32.gmra.mxu0 %v270
        %v944 = vpop.f32.mrf.mxu0
        %v945 = vadd.f32 0.0, %v944
        %v946 = vpop.f32.mrf.mxu0
        %947 = vmatprep.mubr.f32.mxu0 0.0
        %948 = vmatmul.mubr.f32.gmra.mxu0 %v273
        %v949 = vpop.f32.mrf.mxu0
        %v950 = vadd.f32 0.0, %v949
        %v951 = vpop.f32.mrf.mxu0
        %952 = vdwg.mxu0
        %953 = vst.msk [vmem:[#allocation2 + $0x70] sm:$0xff] %vm350, %v945
        %954 = vst.msk [vmem:[#allocation2 + $0x78] sm:$0xff] %vm350, %v950
        %s955 = scalar_lea.vmem %s1, 512
        %v956 = vld [vmem:[%s955] sm:$0xff]
        %v957 = vld [vmem:[%s955 + $0x8] sm:$0xff]
        %v958 = vld [vmem:[%s955 + $0x10] sm:$0xff]
        %v959 = vld [vmem:[%s955 + $0x18] sm:$0xff]
        %v960 = vld [vmem:[%s955 + $0x20] sm:$0xff]
        %v961 = vld [vmem:[%s955 + $0x28] sm:$0xff]
        %v962 = vld [vmem:[%s955 + $0x30] sm:$0xff]
        %v963 = vld [vmem:[%s955 + $0x38] sm:$0xff]
        %964 = vmatprep.subr.mxu0 0.0
        %965 = vmatpush1.msra.mxu0 0.0
        %966 = vmatprep.subr.mxu0 0.0
        %967 = vmatpush1.msra.mxu0 0.0
        %968 = vmatprep.subr.mxu0 0.0
        %969 = vmatpush1.msra.mxu0 0.0
        %970 = vmatprep.subr.mxu0 0.0
        %971 = vmatpush1.msra.mxu0 0.0
        %972 = vmatprep.subr.mxu0 0.0
        %973 = vmatpush1.msra.mxu0 0.0
        %974 = vmatprep.subr.mxu0 0.0
        %975 = vmatpush1.msra.mxu0 0.0
        %976 = vmatprep.subr.mxu0 0.0
        %977 = vmatpush1.msra.mxu0 0.0
        %978 = vmatprep.subr.mxu0 0.0
        %979 = vmatpush1.msra.mxu0 0.0
        %980 = vmatprep.subr.mxu0 0.0
        %981 = vmatpush1.msra.mxu0 %v963
        %982 = vmatprep.subr.mxu0 0.0
        %983 = vmatpush1.msra.mxu0 %v962
        %984 = vmatprep.subr.mxu0 0.0
        %985 = vmatpush1.msra.mxu0 %v961
        %986 = vmatprep.subr.mxu0 0.0
        %987 = vmatpush1.msra.mxu0 %v960
        %988 = vmatprep.subr.mxu0 0.0
        %989 = vmatpush1.msra.mxu0 %v959
        %990 = vmatprep.subr.mxu0 0.0
        %991 = vmatpush1.msra.mxu0 %v958
        %992 = vmatprep.subr.mxu0 0.0
        %993 = vmatpush1.msra.mxu0 %v957
        %994 = vmatprep.subr.mxu0 0.0
        %995 = vmatpush1.msra.mxu0 %v956
        %996 = vmatprep.subr.mxu0 0.0
        %997 = vmatpush2.msra.mxu0 0.0
        %998 = vmatprep.subr.mxu0 0.0
        %999 = vmatpush2.msra.mxu0 0.0
        %1000 = vmatprep.subr.mxu0 0.0
        %1001 = vmatpush2.msra.mxu0 0.0
        %1002 = vmatprep.subr.mxu0 0.0
        %1003 = vmatpush2.msra.mxu0 0.0
        %1004 = vmatprep.subr.mxu0 0.0
        %1005 = vmatpush2.msra.mxu0 0.0
        %1006 = vmatprep.subr.mxu0 0.0
        %1007 = vmatpush2.msra.mxu0 0.0
        %1008 = vmatprep.subr.mxu0 0.0
        %1009 = vmatpush2.msra.mxu0 0.0
        %1010 = vmatprep.subr.mxu0 0.0
        %1011 = vmatpush2.msra.mxu0 0.0
        %1012 = vmatprep.subr.mxu0 0.0
        %1013 = vmatpush2.msra.mxu0 0.0
        %1014 = vmatprep.subr.mxu0 0.0
        %1015 = vmatpush2.msra.mxu0 0.0
        %1016 = vmatprep.subr.mxu0 0.0
        %1017 = vmatpush2.msra.mxu0 0.0
        %1018 = vmatprep.subr.mxu0 0.0
        %1019 = vmatpush2.msra.mxu0 0.0
        %1020 = vmatprep.subr.mxu0 0.0
        %1021 = vmatpush2.msra.mxu0 0.0
        %1022 = vmatprep.subr.mxu0 0.0
        %1023 = vmatpush2.msra.mxu0 0.0
        %1024 = vmatprep.subr.mxu0 0.0
        %1025 = vmatpush2.msra.mxu0 0.0
        %1026 = vmatprep.subr.mxu0 0.0
        %1027 = vmatpush2.msra.mxu0 0.0
        %1028 = vmatprep.mubr.f32.mxu0 0.0
        %1029 = vmatmul.mubr.f32.gmra.mxu0 %v270
        %v1030 = vpop.f32.mrf.mxu0
        %v1031 = vadd.f32 0.0, %v1030
        %v1032 = vpop.f32.mrf.mxu0
        %1033 = vmatprep.mubr.f32.mxu0 0.0
        %1034 = vmatmul.mubr.f32.gmra.mxu0 %v273
        %v1035 = vpop.f32.mrf.mxu0
        %v1036 = vadd.f32 0.0, %v1035
        %v1037 = vpop.f32.mrf.mxu0
        %1038 = vdwg.mxu0
        %1039 = vst.msk [vmem:[#allocation2 + $0x80] sm:$0xff] %vm350, %v1031
        %1040 = vst.msk [vmem:[#allocation2 + $0x88] sm:$0xff] %vm350, %v1036
        %v1041 = vld [vmem:[%s249] sm:$0xff]
        %v1042 = vld [vmem:[%s249 + $0x8] sm:$0xff]
        %v1043 = vld [vmem:[%s249 + $0x10] sm:$0xff]
        %v1044 = vld [vmem:[%s249 + $0x18] sm:$0xff]
        %v1045 = vld [vmem:[#allocation2] sm:$0xff]
        %v1046 = vld [vmem:[#allocation2 + $0x8] sm:$0xff]
        %v1047 = vld [vmem:[#allocation2 + $0x10] sm:$0xff]
        %v1048 = vld [vmem:[#allocation2 + $0x18] sm:$0xff]
        %v1049 = vld [vmem:[#allocation2 + $0x20] sm:$0xff]
        %v1050 = vld [vmem:[#allocation2 + $0x28] sm:$0xff]
        %v1051 = vld [vmem:[#allocation2 + $0x30] sm:$0xff]
        %v1052 = vld [vmem:[#allocation2 + $0x38] sm:$0xff]
        %v1053 = vld [vmem:[#allocation2 + $0x40] sm:$0xff]
        %v1054 = vld [vmem:[#allocation2 + $0x48] sm:$0xff]
        %v1055 = vld [vmem:[#allocation2 + $0x50] sm:$0xff]
        %v1056 = vld [vmem:[#allocation2 + $0x58] sm:$0xff]
        %v1057 = vld [vmem:[#allocation2 + $0x60] sm:$0xff]
        %v1058 = vld [vmem:[#allocation2 + $0x68] sm:$0xff]
        %v1059 = vld [vmem:[#allocation2 + $0x70] sm:$0xff]
        %v1060 = vld [vmem:[#allocation2 + $0x78] sm:$0xff]
        %v1061 = vld [vmem:[#allocation2 + $0x80] sm:$0xff]
        %v1062 = vld [vmem:[#allocation2 + $0x88] sm:$0xff]
        %v1063 = vld [vmem:[%s255] sm:$0xff]
        %v1064 = vld [vmem:[%s255 + $0x8] sm:$0xff]
        %vm1065 = vcmask 130048
        %v1067 = vsel %vm1065, %v1042, 0
        %v1070 = vsel %vm1065, %v1044, 0
        %1072 = vmatprep.subr.mxu0 0.0
        %1073 = vmatpush1.msra.mxu0 %v1060
        %1074 = vmatprep.subr.mxu0 0.0
        %1075 = vmatpush1.msra.mxu0 %v1059
        %1076 = vmatprep.subr.mxu0 0.0
        %1077 = vmatpush1.msra.mxu0 %v1058
        %1078 = vmatprep.subr.mxu0 0.0
        %1079 = vmatpush1.msra.mxu0 %v1057
        %1080 = vmatprep.subr.mxu0 0.0
        %1081 = vmatpush1.msra.mxu0 %v1056
        %1082 = vmatprep.subr.mxu0 0.0
        %1083 = vmatpush1.msra.mxu0 %v1055
        %1084 = vmatprep.subr.mxu0 0.0
        %1085 = vmatpush1.msra.mxu0 %v1054
        %1086 = vmatprep.subr.mxu0 0.0
        %1087 = vmatpush1.msra.mxu0 %v1053
        %1088 = vmatprep.subr.mxu0 0.0
        %1089 = vmatpush1.msra.mxu0 %v1052
        %1090 = vmatprep.subr.mxu0 0.0
        %1091 = vmatpush1.msra.mxu0 %v1051
        %1092 = vmatprep.subr.mxu0 0.0
        %1093 = vmatpush1.msra.mxu0 %v1050
        %1094 = vmatprep.subr.mxu0 0.0
        %1095 = vmatpush1.msra.mxu0 %v1049
        %1096 = vmatprep.subr.mxu0 0.0
        %1097 = vmatpush1.msra.mxu0 %v1048
        %1098 = vmatprep.subr.mxu0 0.0
        %1099 = vmatpush1.msra.mxu0 %v1047
        %1100 = vmatprep.subr.mxu0 0.0
        %1101 = vmatpush1.msra.mxu0 %v1046
        %1102 = vmatprep.subr.mxu0 0.0
        %1103 = vmatpush1.msra.mxu0 %v1045
        %1104 = vmatprep.subr.mxu0 0.0
        %1105 = vmatpush2.msra.mxu0 0.0
        %1106 = vmatprep.subr.mxu0 0.0
        %1107 = vmatpush2.msra.mxu0 0.0
        %1108 = vmatprep.subr.mxu0 0.0
        %1109 = vmatpush2.msra.mxu0 0.0
        %1110 = vmatprep.subr.mxu0 0.0
        %1111 = vmatpush2.msra.mxu0 0.0
        %1112 = vmatprep.subr.mxu0 0.0
        %1113 = vmatpush2.msra.mxu0 0.0
        %1114 = vmatprep.subr.mxu0 0.0
        %1115 = vmatpush2.msra.mxu0 0.0
        %1116 = vmatprep.subr.mxu0 0.0
        %1117 = vmatpush2.msra.mxu0 0.0
        %1118 = vmatprep.subr.mxu0 0.0
        %1119 = vmatpush2.msra.mxu0 0.0
        %1120 = vmatprep.subr.mxu0 0.0
        %1121 = vmatpush2.msra.mxu0 0.0
        %1122 = vmatprep.subr.mxu0 0.0
        %1123 = vmatpush2.msra.mxu0 0.0
        %1124 = vmatprep.subr.mxu0 0.0
        %1125 = vmatpush2.msra.mxu0 0.0
        %1126 = vmatprep.subr.mxu0 0.0
        %1127 = vmatpush2.msra.mxu0 0.0
        %1128 = vmatprep.subr.mxu0 0.0
        %1129 = vmatpush2.msra.mxu0 0.0
        %1130 = vmatprep.subr.mxu0 0.0
        %1131 = vmatpush2.msra.mxu0 0.0
        %1132 = vmatprep.subr.mxu0 0.0
        %1133 = vmatpush2.msra.mxu0 %v1062
        %1134 = vmatprep.subr.mxu0 0.0
        %1135 = vmatpush2.msra.mxu0 %v1061
        %1136 = vmatprep.mubr.f32.mxu0 %v1067
        %1137 = vmatmul.mubr.f32.gmra.mxu0 %v1041
        %v1138 = vpop.f32.mrf.mxu0
        %v1139 = vadd.f32 %v1063, %v1138
        %v1140 = vpop.f32.mrf.mxu0
        %1141 = vmatprep.mubr.f32.mxu0 %v1070
        %1142 = vmatmul.mubr.f32.gmra.mxu0 %v1043
        %v1143 = vpop.f32.mrf.mxu0
        %v1144 = vadd.f32 %v1064, %v1143
        %v1145 = vpop.f32.mrf.mxu0
        %1146 = vdwg.mxu0
        %1147 = vst.msk [vmem:[%s238] sm:$0xff] %vm350, %v1139
        %1148 = vst.msk [vmem:[%s238 + $0x8] sm:$0xff] %vm350, %v1144
        %s1149 = sand.u32 %s139, 1
        %s1150 = scalar_lea.sflag [#allocation4], %s1149
        %s1151 = sand.u32 %s139, 1
        %s1152 = smul.addr %s1151, 16
        %s1153 = scalar_lea.vmem [#allocation3], %s1152
        // Predicated region
        $region37: #{tpu_custom_call.1} parent=35 // pred_check
          %p1154 = pneg %p149
        $region38: #{tpu_custom_call.1} parent=35 // pred_check_branch
          %1156 = sbr.rel (%p1154) target = $region40
        $region39: #{tpu_custom_call.1} parent=35 // pred_region
          %s1157 = smul.u32 2, %s23
          %s1159 = ssub.s32 256, 256
          %1160 = vsyncadd %s1150, %s1159
          %s1161 = smul.addr %s22, 4
          %s1162 = sadd.s32 %s1157, %s1161
          %s1163 = smul.addr %s1162, 128
          %s1164 = scalar_lea.hbm %s4, %s1163
          %s1165 = sshll.u32 %s1153, 4
          %s1166 = int_to_ptr.vmem [resolvable:$true] %s1165
          %1171 = dma.vmem_to_hbm [thread:$0]  %s1166, 256, %s1164, %s1150, 128, 128, 8
        $region40: #{tpu_custom_call.1} parent=35 // pred_fallthru
          _
      $region36: #{tpu_custom_call.1} parent=5 // pred_fallthru
        _
      %p1172 = scmp.le.s32.totalorder 2, %s13
      // Predicated region
      $region41: #{tpu_custom_call.1} parent=5 // pred_check
        %p1173 = pneg %p1172
      $region42: #{tpu_custom_call.1} parent=5 // pred_check_branch
        %1175 = sbr.rel (%p1173) target = $region44
      $region43: #{tpu_custom_call.1} parent=5 // pred_region
        %s1176 = ssub.s32 %s13, 2
        // Predicated region
        $region45: #{tpu_custom_call.1} parent=43 // pred_check
          %p1177 = pneg %p155
        $region46: #{tpu_custom_call.1} parent=43 // pred_check_branch
          %1179 = sbr.rel (%p1177) target = $region48
        $region47: #{tpu_custom_call.1} parent=43 // pred_region
          %s1180 = sand.u32 %s140, 1
          %s1181 = scalar_lea.sflag [#allocation4], %s1180
          %s1182 = sand.u32 %s140, 1
          %s1183 = smul.addr %s1182, 16
          %s1184 = scalar_lea.vmem [#allocation3], %s1183
          %1185 = dma.done %s1181, 256
        $region48: #{tpu_custom_call.1} parent=43 // pred_fallthru
          _
      $region44: #{tpu_custom_call.1} parent=5 // pred_fallthru
        _
    $region6: #{tpu_custom_call.1} parent=1 // loop_footer
      %s17 = sadd.s32 1, %s13
    $region7: #{tpu_custom_call.1} parent=1 // loop_footer_branch
      %12 = sbr.rel target = $region3
    $region8: #{tpu_custom_call.1} parent=1 // loop_exit
      _
    %1186 = vsyncpa [#allocation4], 1
    %s1187 = scalar_lea.sflag [#allocation4], 1
    %1188 = vsyncpa %s1187, 1

</llo_original>
